<compile_context>
chip_gen: v7x
topology: tpu7x:2x2x1
jax: 0.10.0
libtpu: 0.0.40
codegen_flags: <defaults>
</compile_context>

<pallas_src>
import functools

import jax
import jax.numpy as jnp
from jax.experimental import pallas as pl
from jax.experimental.pallas import tpu as pltpu

# Keep f32 matmuls at full precision everywhere (kernel, prep, reference) so the
# Pallas kernel and the pure-JAX reference agree to ~1e-6.
jax.config.update("jax_default_matmul_precision", "highest")

KP = 128        # fused weight width (one lane tile); gate columns are [r | z | n_h | i_n]
EP_WIDTH = 256  # padded width of the precomputed embedding-projection row (196 -> 256)


def _aux_rows(H):
    """Rows of the fused weight used as parameter storage (sublane-aligned)."""
    return H, H + 8, H + 16          # x-coefficients row, bias row, w_out-hidden row


# --------------------------------------------------------------------------------------
# Kernel core (shared by the single-step and the in-kernel-loop rollout variants)
# --------------------------------------------------------------------------------------
def _gru_core(h, x, tt, w_ref, ep, *, H):
    row_x, row_b, row_oh = _aux_rows(H)

    w_h = w_ref[0:H, :]                      # (H, 128)  W_hh^T -> gate columns
    w_x = w_ref[row_x:row_x + 1, :]          # (1, 128)  x coefficients per column
    w_b = w_ref[row_b:row_b + 1, :]          # (1, 128)  combined biases per column
    w_oh = w_ref[row_oh:row_oh + 1, 0:H]     # (1, H)    output-layer weights for h_new

    # One MXU push (B,H)@(H,128) + x / bias contributions on the VPU.
    # Columns: [ r-preact | z-preact | W_hn h + b_hn | W_in x + b_in ]
    g = jnp.dot(h, w_h, preferred_element_type=jnp.float32,
                precision=jax.lax.Precision.HIGHEST)
    g = g + x * w_x + w_b

    r = jax.nn.sigmoid(g[:, 0:H])
    z = jax.nn.sigmoid(g[:, H:2 * H])
    n = jnp.tanh(g[:, 3 * H:4 * H] + r * g[:, 2 * H:3 * H])
    h_new = (1.0 - z) * n + z * h

    # Time-embedding contribution to the output, looked up IN-KERNEL:
    # ep[0, t] = embedding[t] . w_out_emb + b_out  (precomputed once).
    # One-hot compare + lane reduce -> no gather / dynamic indexing needed.
    lane = jax.lax.broadcasted_iota(jnp.int32, ep.shape, 1)        # (1, 256)
    onehot = (tt == lane).astype(jnp.float32)                      # (B, 256)
    e = jnp.sum(onehot * ep, axis=1, keepdims=True)                # (B, 1)

    o = e + jnp.sum(h_new * w_oh, axis=1, keepdims=True)
    o = jnp.maximum(o, 0.0)   # NB: the module's `self.sigmoid` is actually nn.ReLU()
    return h_new, o


def decoder_step_kernel(x_ref, t_ref, h_ref, w_ref, ep_ref, out_ref, *, H):
    h_new, o = _gru_core(h_ref[...], x_ref[...], t_ref[...], w_ref, ep_ref[...], H=H)
    B, width = out_ref.shape
    # Lane-dense packed output: [ h_new (H) | out (1) | zero pad ]  -> one full store.
    out_ref[...] = jnp.concatenate(
        [h_new, o, jnp.zeros((B, width - H - 1), jnp.float32)], axis=1)


def decoder_rollout_kernel(x_ref, t_ref, h0_ref, w_ref, ep_ref, out_ref, h_carry, *, H):
    @pl.when(pl.program_id(0) == 0)
    def _():
        h_carry[...] = h0_ref[...]

    h_new, o = _gru_core(h_carry[...], x_ref[0], t_ref[0], w_ref, ep_ref[...], H=H)
    h_carry[...] = h_new

    B = h_new.shape[0]
    width = out_ref.shape[2]
    out_ref[0] = jnp.concatenate(
        [h_new, o, jnp.zeros((B, width - H - 1), jnp.float32)], axis=1)


# --------------------------------------------------------------------------------------
# Parameter init / one-time packing
# --------------------------------------------------------------------------------------
def init_params(key, hidden_size=32, embedding_size=64, output_size=1, n_embeddings=196):
    ks = jax.random.split(key, 7)
    H, E, O = hidden_size, embedding_size, output_size
    s_gru = 1.0 / jnp.sqrt(H)
    s_out = 1.0 / jnp.sqrt(H + E)
    return {
        "embedding": jax.random.normal(ks[0], (n_embeddings, E), jnp.float32),
        "w_ih": jax.random.uniform(ks[1], (3 * H, 1), jnp.float32, -s_gru, s_gru),
        "w_hh": jax.random.uniform(ks[2], (3 * H, H), jnp.float32, -s_gru, s_gru),
        "b_ih": jax.random.uniform(ks[3], (3 * H,), jnp.float32, -s_gru, s_gru),
        "b_hh": jax.random.uniform(ks[4], (3 * H,), jnp.float32, -s_gru, s_gru),
        # Linear input layout is [emb (E) | h (H)] (cat order in the module forward).
        "w_out": jax.random.uniform(ks[5], (O, E + H), jnp.float32, -s_out, s_out),
        "b_out": jax.random.uniform(ks[6], (O,), jnp.float32, -s_out, s_out),
    }


def prepare_decoder_params(params):
    """One-time packing of all weights (hoisted out of the decode step)."""
    H = params["w_hh"].shape[1]
    E = params["embedding"].shape[1]
    O = params["w_out"].shape[0]
    n_emb = params["embedding"].shape[0]
    assert O == 1, "fused layout assumes output_size == 1"
    assert H % 8 == 0 and 4 * H <= KP, "gate columns [r|z|n_h|i_n] must fit one lane tile"
    assert n_emb <= EP_WIDTH

    row_x, row_b, row_oh = _aux_rows(H)
    w_ih, w_hh = params["w_ih"], params["w_hh"]
    b_ih, b_hh = params["b_ih"], params["b_hh"]
    w_out, b_out = params["w_out"], params["b_out"]

    w_big = jnp.zeros((KP, KP), jnp.float32)
    # Rows 0:H -> W_hh^T mapped onto gate columns (i_n columns have no h dependence).
    w_big = w_big.at[0:H, 0:H].set(w_hh[0:H, :].T)
    w_big = w_big.at[0:H, H:2 * H].set(w_hh[H:2 * H, :].T)
    w_big = w_big.at[0:H, 2 * H:3 * H].set(w_hh[2 * H:3 * H, :].T)
    # x-coefficient row.
    w_big = w_big.at[row_x, 0:H].set(w_ih[0:H, 0])
    w_big = w_big.at[row_x, H:2 * H].set(w_ih[H:2 * H, 0])
    w_big = w_big.at[row_x, 3 * H:4 * H].set(w_ih[2 * H:3 * H, 0])
    # bias row.
    w_big = w_big.at[row_b, 0:H].set(b_ih[0:H] + b_hh[0:H])
    w_big = w_big.at[row_b, H:2 * H].set(b_ih[H:2 * H] + b_hh[H:2 * H])
    w_big = w_big.at[row_b, 2 * H:3 * H].set(b_hh[2 * H:3 * H])
    w_big = w_big.at[row_b, 3 * H:4 * H].set(b_ih[2 * H:3 * H])
    # output-layer hidden weights stashed in a spare row (aux folded into w_big).
    w_big = w_big.at[row_oh, 0:H].set(w_out[0, E:E + H])

    # Precompute embedding @ w_out_emb + b_out once (196 scalars, padded to 256 lanes).
    ep = jnp.dot(params["embedding"], w_out[0, :E],
                 precision=jax.lax.Precision.HIGHEST) + b_out[0]
    emb_proj = jnp.zeros((1, EP_WIDTH), jnp.float32).at[0, :n_emb].set(ep)

    return {"w_big": w_big, "emb_proj": emb_proj}


# --------------------------------------------------------------------------------------
# Wrappers
# --------------------------------------------------------------------------------------
def decoder_gru_step(prep, input_speed, time, hidden):
    """Exact equivalent of the module's forward (one GRU step)."""
    H = hidden.shape[-1]
    B = input_speed.reshape(-1).shape[0]
    x = input_speed.reshape(B, 1).astype(jnp.float32)
    tt = time.reshape(B, 1).astype(jnp.int32)
    h0 = hidden.reshape(B, H).astype(jnp.float32)

    vmem = pl.BlockSpec(memory_space=pltpu.MemorySpace.VMEM)
    packed = pl.pallas_call(
        functools.partial(decoder_step_kernel, H=H),
        out_shape=jax.ShapeDtypeStruct((B, KP), jnp.float32),
        in_specs=[vmem, vmem, vmem, vmem, vmem],
        out_specs=vmem,
    )(x, tt, h0, prep["w_big"], prep["emb_proj"])

    out = packed[:, H:H + 1]
    h_new = packed[:, 0:H].reshape(1, B, H)
    return out, h_new


def decoder_gru_rollout(prep, speeds, times, hidden):
    """T applications of the module forward inside ONE pallas_call (weights resident)."""
    H = hidden.shape[-1]
    T, B = speeds.shape
    x = speeds.reshape(T, B, 1).astype(jnp.float32)
    tt = times.reshape(T, B, 1).astype(jnp.int32)
    h0 = hidden.reshape(B, H).astype(jnp.float32)

    packed = pl.pallas_call(
        functools.partial(decoder_rollout_kernel, H=H),
        grid=(T,),
        in_specs=[
            pl.BlockSpec((1, B, 1), lambda t: (t, 0, 0)),          # per-step speed
            pl.BlockSpec((1, B, 1), lambda t: (t, 0, 0)),          # per-step time idx
            pl.BlockSpec((B, H), lambda t: (0, 0)),                # h0 (read at t==0)
            pl.BlockSpec((KP, KP), lambda t: (0, 0)),              # fused weight, resident
            pl.BlockSpec((1, EP_WIDTH), lambda t: (0, 0)),         # emb projection, resident
        ],
        out_specs=pl.BlockSpec((1, B, KP), lambda t: (t, 0, 0)),   # lane-dense per-step slab
        out_shape=jax.ShapeDtypeStruct((T, B, KP), jnp.float32),
        scratch_shapes=[pltpu.VMEM((B, H), jnp.float32)],          # hidden-state carry
        compiler_params=pltpu.CompilerParams(dimension_semantics=("arbitrary",)),
    )(x, tt, h0, prep["w_big"], prep["emb_proj"])

    outs = packed[:, :, H:H + 1]                   # (T, B, 1)
    h_last = packed[-1, :, 0:H].reshape(1, B, H)
    return outs, h_last


# --------------------------------------------------------------------------------------
# Pure-JAX reference mirroring the PyTorch forward
# --------------------------------------------------------------------------------------
def decoder_gru_reference(params, input_speed, time, hidden):
    H = params["w_hh"].shape[1]
    B = input_speed.reshape(-1).shape[0]
    x = input_speed.reshape(B, 1).astype(jnp.float32)
    emb = jnp.take(params["embedding"], time.reshape(-1), axis=0)
    h = hidden.reshape(B, H)
    gi = x @ params["w_ih"].T + params["b_ih"]
    gh = h @ params["w_hh"].T + params["b_hh"]
    r = jax.nn.sigmoid(gi[:, :H] + gh[:, :H])
    z = jax.nn.sigmoid(gi[:, H:2 * H] + gh[:, H:2 * H])
    n = jnp.tanh(gi[:, 2 * H:] + r * gh[:, 2 * H:])
    h_new = (1.0 - z) * n + z * h
    cat = jnp.concatenate([emb, h_new], axis=1)
    o = cat @ params["w_out"].T + params["b_out"]
    return jnp.maximum(o, 0.0), h_new.reshape(1, B, H)


if __name__ == "__main__":
    B, H, E, O, T = 8, 32, 64, 1, 16

    key = jax.random.PRNGKey(0)
    kp, k1, k2, k3, k4 = jax.random.split(key, 5)
    params = init_params(kp, hidden_size=H, embedding_size=E, output_size=O)
    prep = prepare_decoder_params(params)          # one-time packing, out of the step path

    # ---- single-step forward (module semantics) ----
    input_speed = jax.random.uniform(k1, (B,), jnp.float32)
    time_idx = jax.random.randint(k2, (B,), 0, 196, jnp.int32)
    hidden = jnp.zeros((1, B, H), jnp.float32)     # initHidden()

    step = jax.jit(decoder_gru_step)
    out, h_new = jax.block_until_ready(step(prep, input_speed, time_idx, hidden))

    out_ref, h_ref = decoder_gru_reference(params, input_speed, time_idx, hidden)
    assert out.shape == (B, O) and h_new.shape == (1, B, H)
    assert jnp.allclose(out, out_ref, atol=1e-4, rtol=1e-4)
    assert jnp.allclose(h_new, h_ref, atol=1e-4, rtol=1e-4)

    # ---- T-step rollout inside one pallas_call (review item #1) ----
    speeds = jax.random.uniform(k3, (T, B), jnp.float32)
    times = jax.random.randint(k4, (T, B), 0, 196, jnp.int32)

    rollout = jax.jit(decoder_gru_rollout)
    outs, h_last = jax.block_until_ready(rollout(prep, speeds, times, hidden))

    outs_r, h_r = [], hidden
    for t in range(T):
        o_r, h_r = decoder_gru_reference(params, speeds[t], times[t], h_r)
        outs_r.append(o_r)
    outs_r = jnp.stack(outs_r)
    assert outs.shape == (T, B, O) and h_last.shape == (1, B, H)
    assert jnp.allclose(outs, outs_r, atol=1e-4, rtol=1e-4)
    assert jnp.allclose(h_last, h_r, atol=1e-4, rtol=1e-4)

    print("KERNEL_OK")
</pallas_src>

<mosaic_0001>
module attributes {stable_mosaic.version = 11 : i64} {
  func.func @decoder_step_kernel(%arg0: memref<8x1xf32, #tpu.memory_space<vmem>>, %arg1: memref<8x1xi32, #tpu.memory_space<vmem>>, %arg2: memref<8x32xf32, #tpu.memory_space<vmem>>, %arg3: memref<128x128xf32, #tpu.memory_space<vmem>>, %arg4: memref<1x256xf32, #tpu.memory_space<vmem>>, %arg5: memref<8x128xf32, #tpu.memory_space<vmem>>) attributes {dimension_semantics = [], scalar_prefetch = 0 : i64, scratch_operands = 0 : i64, tpu.core_type = #tpu.core_type<tc>} {
    %c0 = arith.constant 0 : index
    %c0_0 = arith.constant 0 : index
    %0 = vector.load %arg2[%c0, %c0_0] : memref<8x32xf32, #tpu.memory_space<vmem>>, vector<8x32xf32>
    %c0_1 = arith.constant 0 : index
    %c0_2 = arith.constant 0 : index
    %1 = vector.load %arg0[%c0_1, %c0_2] : memref<8x1xf32, #tpu.memory_space<vmem>>, vector<8x1xf32>
    %c0_3 = arith.constant 0 : index
    %c0_4 = arith.constant 0 : index
    %2 = vector.load %arg1[%c0_3, %c0_4] : memref<8x1xi32, #tpu.memory_space<vmem>>, vector<8x1xi32>
    %c0_5 = arith.constant 0 : index
    %c0_6 = arith.constant 0 : index
    %3 = vector.load %arg4[%c0_5, %c0_6] : memref<1x256xf32, #tpu.memory_space<vmem>>, vector<1x256xf32>
    %c0_7 = arith.constant 0 : index
    %c0_8 = arith.constant 0 : index
    %4 = vector.load %arg3[%c0_7, %c0_8] : memref<128x128xf32, #tpu.memory_space<vmem>>, vector<32x128xf32>
    %c32 = arith.constant 32 : index
    %c0_9 = arith.constant 0 : index
    %5 = vector.load %arg3[%c32, %c0_9] : memref<128x128xf32, #tpu.memory_space<vmem>>, vector<1x128xf32>
    %c40 = arith.constant 40 : index
    %c0_10 = arith.constant 0 : index
    %6 = vector.load %arg3[%c40, %c0_10] : memref<128x128xf32, #tpu.memory_space<vmem>>, vector<1x128xf32>
    %c48 = arith.constant 48 : index
    %c0_11 = arith.constant 0 : index
    %7 = vector.load %arg3[%c48, %c0_11] : memref<128x128xf32, #tpu.memory_space<vmem>>, vector<1x32xf32>
    %cst = arith.constant dense<0.000000e+00> : vector<8x128xf32>
    %8 = tpu.matmul %0, %4, %cst {dimension_numbers = #tpu.dot_dimension_numbers<[1], [0], [0], [1], [0, 0, 1, 1], [], []>, precision = #tpu.contract_precision<fp32>} : vector<8x32xf32>, vector<32x128xf32>, vector<8x128xf32> -> vector<8x128xf32>
    %9 = vector.broadcast %1 : vector<8x1xf32> to vector<8x128xf32>
    %10 = vector.broadcast %5 : vector<1x128xf32> to vector<8x128xf32>
    %11 = arith.mulf %9, %10 : vector<8x128xf32>
    %12 = arith.addf %8, %11 : vector<8x128xf32>
    %13 = vector.broadcast %6 : vector<1x128xf32> to vector<8x128xf32>
    %14 = arith.addf %12, %13 : vector<8x128xf32>
    %15 = vector.extract_strided_slice %14 {offsets = [0, 0], sizes = [8, 32], strides = [1, 1]} : vector<8x128xf32> to vector<8x32xf32>
    %16 = arith.negf %15 : vector<8x32xf32>
    %17 = math.exp %16 : vector<8x32xf32>
    %cst_12 = arith.constant 1.000000e+00 : f32
    %18 = vector.broadcast %cst_12 : f32 to vector<8x32xf32>
    %19 = arith.addf %18, %17 : vector<8x32xf32>
    %20 = arith.divf %18, %19 : vector<8x32xf32>
    %21 = vector.extract_strided_slice %14 {offsets = [0, 32], sizes = [8, 32], strides = [1, 1]} : vector<8x128xf32> to vector<8x32xf32>
    %22 = arith.negf %21 : vector<8x32xf32>
    %23 = math.exp %22 : vector<8x32xf32>
    %cst_13 = arith.constant 1.000000e+00 : f32
    %24 = vector.broadcast %cst_13 : f32 to vector<8x32xf32>
    %25 = arith.addf %24, %23 : vector<8x32xf32>
    %26 = arith.divf %24, %25 : vector<8x32xf32>
    %27 = vector.extract_strided_slice %14 {offsets = [0, 96], sizes = [8, 32], strides = [1, 1]} : vector<8x128xf32> to vector<8x32xf32>
    %28 = vector.extract_strided_slice %14 {offsets = [0, 64], sizes = [8, 32], strides = [1, 1]} : vector<8x128xf32> to vector<8x32xf32>
    %29 = arith.mulf %20, %28 : vector<8x32xf32>
    %30 = arith.addf %27, %29 : vector<8x32xf32>
    %31 = math.tanh %30 : vector<8x32xf32>
    %cst_14 = arith.constant 1.000000e+00 : f32
    %32 = vector.broadcast %cst_14 : f32 to vector<8x32xf32>
    %33 = arith.subf %32, %26 : vector<8x32xf32>
    %34 = arith.mulf %33, %31 : vector<8x32xf32>
    %35 = arith.mulf %26, %0 : vector<8x32xf32>
    %36 = arith.addf %34, %35 : vector<8x32xf32>
    %37 = tpu.iota {dimensions = array<i32: 1>} : vector<1x256xi32>
    %38 = vector.broadcast %2 : vector<8x1xi32> to vector<8x256xi32>
    %39 = vector.broadcast %37 : vector<1x256xi32> to vector<8x256xi32>
    %40 = arith.cmpi eq, %38, %39 : vector<8x256xi32>
    %41 = arith.extui %40 : vector<8x256xi1> to vector<8x256xi32>
    %42 = arith.sitofp %41 : vector<8x256xi32> to vector<8x256xf32>
    %43 = vector.broadcast %3 : vector<1x256xf32> to vector<8x256xf32>
    %44 = arith.mulf %42, %43 : vector<8x256xf32>
    %cst_15 = arith.constant dense<0.000000e+00> : vector<8xf32>
    %45 = vector.multi_reduction <add>, %44, %cst_15 [1] : vector<8x256xf32> to vector<8xf32>
    %46 = vector.shape_cast %45 : vector<8xf32> to vector<8x1xf32>
    %47 = vector.broadcast %7 : vector<1x32xf32> to vector<8x32xf32>
    %48 = arith.mulf %36, %47 : vector<8x32xf32>
    %cst_16 = arith.constant dense<0.000000e+00> : vector<8xf32>
    %49 = vector.multi_reduction <add>, %48, %cst_16 [1] : vector<8x32xf32> to vector<8xf32>
    %50 = vector.shape_cast %49 : vector<8xf32> to vector<8x1xf32>
    %51 = arith.addf %46, %50 : vector<8x1xf32>
    %cst_17 = arith.constant 0.000000e+00 : f32
    %52 = vector.broadcast %cst_17 : f32 to vector<8x1xf32>
    %53 = arith.maximumf %51, %52 : vector<8x1xf32>
    %cst_18 = arith.constant 0.000000e+00 : f32
    %54 = vector.broadcast %cst_18 : f32 to vector<8x95xf32>
    %55 = tpu.concatenate %36, %53, %54 in 1 : vector<8x32xf32>, vector<8x1xf32>, vector<8x95xf32> -> vector<8x128xf32>
    %c0_19 = arith.constant 0 : index
    %c0_20 = arith.constant 0 : index
    %56 = vector.load %arg5[%c0_19, %c0_20] : memref<8x128xf32, #tpu.memory_space<vmem>>, vector<8x128xf32>
    tpu.vector_store %arg5[%c0_19, %c0_20], %55 {strides = array<i32>} : memref<8x128xf32, #tpu.memory_space<vmem>>, vector<8x128xf32>,
    return
  }
}

</mosaic_0001>

<llo_original>
// kernel: decoder_gru_step.1
$region0: #{decoder_gru_step.1}
  #allocation0 [shape = 'u32[]', space=smem, size = 0x4, offset = 0x4, fixed_abs, tag = 'smem constant byte address 0x4 - core index']
  #allocation1 [shape = 'u32[144,128]{1,0:T(1,128)}', space=vmem, size = 0x12000, scoped, tag = 'internal scratch']
  %s0 = inlined_call_operand.vmem [shape: f32[8,1], index: 0, kind: input, shape index: {}]
  %s1 = inlined_call_operand.vmem [shape: s32[8,1], index: 1, kind: input, shape index: {}]
  %s2 = inlined_call_operand.vmem [shape: f32[8,32], index: 2, kind: input, shape index: {}]
  %s3 = inlined_call_operand.hbm [shape: f32[128,128], index: 3, kind: input, shape index: {}]
  %s4 = inlined_call_operand.vmem [shape: f32[1,256], index: 4, kind: input, shape index: {}]
  %s5 = inlined_call_operand.vmem [shape: f32[8,128], index: 5, kind: output, shape index: {}]
  %s6 = sld [smem:[#allocation0]]
  $region34: #{decoder_gru_step.1} parent=0
    _
  %s8 = ssub.s32 1, %s6
  %s9 = scalar_select 0, %s8, %s6
  $region1: #{decoder_gru_step.1} parent=0
    #allocation2 [shape = 'u8[65536]{0}', space=vmem, size = 0x10000, scoped, tag = 'input window, operand 3, single buffered']
    #allocation3 [shape = 's32[1]{0}', space=sflag, size = 0x4, scoped, tag = 'scoped memory for decoder_gru_step.1']
    %10 = vsyncpa [#allocation3], 0
    // Predicated region
    $region2: #{decoder_gru_step.1} parent=1 // pred_check
      _
    $region3: #{decoder_gru_step.1} parent=1 // pred_check_branch
      %12 = sbr.rel (0) target = $region5
    $region4: #{decoder_gru_step.1} parent=1 // pred_region
      _
    $region5: #{decoder_gru_step.1} parent=1 // pred_fallthru
      _
    // Predicated region
    $region6: #{decoder_gru_step.1} parent=1 // pred_check
      _
    $region7: #{decoder_gru_step.1} parent=1 // pred_check_branch
      %14 = sbr.rel (0) target = $region9
    $region8: #{decoder_gru_step.1} parent=1 // pred_region
      _
    $region9: #{decoder_gru_step.1} parent=1 // pred_fallthru
      _
    // Predicated region
    $region10: #{decoder_gru_step.1} parent=1 // pred_check
      _
    $region11: #{decoder_gru_step.1} parent=1 // pred_check_branch
      %16 = sbr.rel (0) target = $region13
    $region12: #{decoder_gru_step.1} parent=1 // pred_region
      _
    $region13: #{decoder_gru_step.1} parent=1 // pred_fallthru
      _
    // Predicated region
    $region14: #{decoder_gru_step.1} parent=1 // pred_check
      _
    $region15: #{decoder_gru_step.1} parent=1 // pred_check_branch
      %18 = sbr.rel (0) target = $region17
    $region16: #{decoder_gru_step.1} parent=1 // pred_region
      %s20 = ssub.s32 2048, 2048
      %21 = vsyncadd [#allocation3], %s20
      %s22 = sshll.u32 [#allocation2], 4
      %s23 = int_to_ptr.vmem [resolvable:$true] %s22
      %28 = dma.hbm_to_vmem [thread:$0]  %s3, 2048, %s23, [#allocation3], 128, 128, 8
    $region17: #{decoder_gru_step.1} parent=1 // pred_fallthru
      _
    // Predicated region
    $region18: #{decoder_gru_step.1} parent=1 // pred_check
      _
    $region19: #{decoder_gru_step.1} parent=1 // pred_check_branch
      %30 = sbr.rel (0) target = $region21
    $region20: #{decoder_gru_step.1} parent=1 // pred_region
      _
    $region21: #{decoder_gru_step.1} parent=1 // pred_fallthru
      _
    // Predicated region
    $region22: #{decoder_gru_step.1} parent=1 // pred_check
      _
    $region23: #{decoder_gru_step.1} parent=1 // pred_check_branch
      %32 = sbr.rel (0) target = $region25
    $region24: #{decoder_gru_step.1} parent=1 // pred_region
      %33 = dma.done [#allocation3], 2048
    $region25: #{decoder_gru_step.1} parent=1 // pred_fallthru
      _
    %v34 = vld [vmem:[%s2] sm:$0xff]
    %v35 = vld [vmem:[%s0] sm:$0xff]
    %v36 = vld [vmem:[%s1] sm:$0xff]
    %v37 = vld [vmem:[%s4] sm:$0x3]
    %v38 = vld [vmem:[#allocation2] sm:$0xff]
    %v39 = vld [vmem:[#allocation2 + $0x8] sm:$0xff]
    %v40 = vld [vmem:[#allocation2 + $0x10] sm:$0xff]
    %v41 = vld [vmem:[#allocation2 + $0x18] sm:$0xff]
    %v42 = vld [vmem:[#allocation2 + $0x20] sm:$0x1]
    %v43 = vld [vmem:[#allocation2 + $0x28] sm:$0x1]
    %v44 = vld [vmem:[#allocation2 + $0x30] sm:$0x1]
    %46 = vset.pattern.permute.xlu0 0
    %47 = vperm.xlu0 %46, %v35
    %v48 = vpop.permute.xlu0 %47
    %v50 = vlaneseq
    %v51 = vshrl.u32 %v50, 7
    %v52 = vsub.s32 0, %v51
    %v53 = vrot.slane %v42, %v52
    %v54 = vmul.f32 %v48, %v53
    %vm55 = vcmask 261120
    %v57 = vsel %vm55, %v34, 0
    %59 = vmatprep.subr.mxu0 0.0
    %v60 = vand.u32 %v38, 4294901760
    %61 = vmatpush1.msra.mxu0 %v60
    %62 = vmatprep.subr.mxu0 0.0
    %v63 = vand.u32 %v39, 4294901760
    %64 = vmatpush1.msra.mxu0 %v63
    %65 = vmatprep.subr.mxu0 0.0
    %v66 = vand.u32 %v40, 4294901760
    %67 = vmatpush1.msra.mxu0 %v66
    %68 = vmatprep.subr.mxu0 0.0
    %v69 = vand.u32 %v41, 4294901760
    %70 = vmatpush1.msra.mxu0 %v69
    %71 = vmatprep.subr.mxu0 0.0
    %72 = vmatpush1.msra.mxu0 0.0
    %73 = vmatprep.subr.mxu0 0.0
    %74 = vmatpush1.msra.mxu0 0.0
    %75 = vmatprep.subr.mxu0 0.0
    %76 = vmatpush1.msra.mxu0 0.0
    %77 = vmatprep.subr.mxu0 0.0
    %78 = vmatpush1.msra.mxu0 0.0
    %79 = vmatprep.subr.mxu0 0.0
    %80 = vmatpush1.msra.mxu0 0.0
    %81 = vmatprep.subr.mxu0 0.0
    %82 = vmatpush1.msra.mxu0 0.0
    %83 = vmatprep.subr.mxu0 0.0
    %84 = vmatpush1.msra.mxu0 0.0
    %85 = vmatprep.subr.mxu0 0.0
    %86 = vmatpush1.msra.mxu0 0.0
    %87 = vmatprep.subr.mxu0 0.0
    %88 = vmatpush1.msra.mxu0 0.0
    %89 = vmatprep.subr.mxu0 0.0
    %90 = vmatpush1.msra.mxu0 0.0
    %91 = vmatprep.subr.mxu0 0.0
    %92 = vmatpush1.msra.mxu0 0.0
    %93 = vmatprep.subr.mxu0 0.0
    %94 = vmatpush1.msra.mxu0 0.0
    %95 = vmatprep.subr.mxu0 0.0
    %96 = vmatpush1.msra.mxu0 0.0
    %97 = vmatprep.subr.mxu0 0.0
    %98 = vmatpush1.msra.mxu0 0.0
    %99 = vmatprep.subr.mxu0 0.0
    %100 = vmatpush1.msra.mxu0 0.0
    %101 = vmatprep.subr.mxu0 0.0
    %102 = vmatpush1.msra.mxu0 0.0
    %103 = vmatprep.subr.mxu0 0.0
    %104 = vmatpush1.msra.mxu0 0.0
    %105 = vmatprep.subr.mxu0 0.0
    %106 = vmatpush1.msra.mxu0 0.0
    %107 = vmatprep.subr.mxu0 0.0
    %108 = vmatpush1.msra.mxu0 0.0
    %109 = vmatprep.subr.mxu0 0.0
    %110 = vmatpush1.msra.mxu0 0.0
    %111 = vmatprep.subr.mxu0 0.0
    %112 = vmatpush1.msra.mxu0 0.0
    %113 = vmatprep.subr.mxu0 0.0
    %114 = vmatpush1.msra.mxu0 0.0
    %115 = vmatprep.subr.mxu0 0.0
    %116 = vmatpush1.msra.mxu0 0.0
    %117 = vmatprep.subr.mxu0 0.0
    %118 = vmatpush1.msra.mxu0 0.0
    %119 = vmatprep.subr.mxu0 0.0
    %120 = vmatpush1.msra.mxu0 0.0
    %121 = vmatprep.subr.mxu0 0.0
    %122 = vmatpush1.msra.mxu0 0.0
    %123 = vmatprep.subr.mxu0 0.0
    %124 = vmatpush1.msra.mxu0 0.0
    %125 = vmatprep.subr.mxu0 0.0
    %126 = vmatpush1.msra.mxu0 0.0
    %127 = vmatprep.mubr.f32.mxu0 0.0
    %v128 = vand.u32 %v57, 4294901760
    %v129 = vsub.f32 %v57, %v128
    %v130 = vand.u32 %v129, 4294901760
    %v131 = vsub.f32 %v129, %v130
    %v132 = vand.u32 %v131, 4294901760
    %133 = vmatmul.mubr.f32.gmra.mrb[0].mxu0 %v132
    %v134 = vpop.f32.mrb[0].mxu0
    %v135 = vadd.f32 %v54, %v134
    %v136 = vpop.f32.mrb[0].mxu0
    %137 = vdwg.mxu0
    %138 = vmatprep.subr.mxu0 0.0
    %v139 = vand.u32 %v38, 4294901760
    %v140 = vsub.f32 %v38, %v139
    %v141 = vand.u32 %v140, 4294901760
    %v142 = vsub.f32 %v140, %v141
    %v143 = vand.u32 %v142, 4294901760
    %144 = vmatpush1.msra.mxu0 %v143
    %145 = vmatprep.subr.mxu0 0.0
    %v146 = vand.u32 %v39, 4294901760
    %v147 = vsub.f32 %v39, %v146
    %v148 = vand.u32 %v147, 4294901760
    %v149 = vsub.f32 %v147, %v148
    %v150 = vand.u32 %v149, 4294901760
    %151 = vmatpush1.msra.mxu0 %v150
    %152 = vmatprep.subr.mxu0 0.0
    %v153 = vand.u32 %v40, 4294901760
    %v154 = vsub.f32 %v40, %v153
    %v155 = vand.u32 %v154, 4294901760
    %v156 = vsub.f32 %v154, %v155
    %v157 = vand.u32 %v156, 4294901760
    %158 = vmatpush1.msra.mxu0 %v157
    %159 = vmatprep.subr.mxu0 0.0
    %v160 = vand.u32 %v41, 4294901760
    %v161 = vsub.f32 %v41, %v160
    %v162 = vand.u32 %v161, 4294901760
    %v163 = vsub.f32 %v161, %v162
    %v164 = vand.u32 %v163, 4294901760
    %165 = vmatpush1.msra.mxu0 %v164
    %166 = vmatprep.subr.mxu0 0.0
    %167 = vmatpush1.msra.mxu0 0.0
    %168 = vmatprep.subr.mxu0 0.0
    %169 = vmatpush1.msra.mxu0 0.0
    %170 = vmatprep.subr.mxu0 0.0
    %171 = vmatpush1.msra.mxu0 0.0
    %172 = vmatprep.subr.mxu0 0.0
    %173 = vmatpush1.msra.mxu0 0.0
    %174 = vmatprep.subr.mxu0 0.0
    %175 = vmatpush1.msra.mxu0 0.0
    %176 = vmatprep.subr.mxu0 0.0
    %177 = vmatpush1.msra.mxu0 0.0
    %178 = vmatprep.subr.mxu0 0.0
    %179 = vmatpush1.msra.mxu0 0.0
    %180 = vmatprep.subr.mxu0 0.0
    %181 = vmatpush1.msra.mxu0 0.0
    %182 = vmatprep.subr.mxu0 0.0
    %183 = vmatpush1.msra.mxu0 0.0
    %184 = vmatprep.subr.mxu0 0.0
    %185 = vmatpush1.msra.mxu0 0.0
    %186 = vmatprep.subr.mxu0 0.0
    %187 = vmatpush1.msra.mxu0 0.0
    %188 = vmatprep.subr.mxu0 0.0
    %189 = vmatpush1.msra.mxu0 0.0
    %190 = vmatprep.subr.mxu0 0.0
    %191 = vmatpush1.msra.mxu0 0.0
    %192 = vmatprep.subr.mxu0 0.0
    %193 = vmatpush1.msra.mxu0 0.0
    %194 = vmatprep.subr.mxu0 0.0
    %195 = vmatpush1.msra.mxu0 0.0
    %196 = vmatprep.subr.mxu0 0.0
    %197 = vmatpush1.msra.mxu0 0.0
    %198 = vmatprep.subr.mxu0 0.0
    %199 = vmatpush1.msra.mxu0 0.0
    %200 = vmatprep.subr.mxu0 0.0
    %201 = vmatpush1.msra.mxu0 0.0
    %202 = vmatprep.subr.mxu0 0.0
    %203 = vmatpush1.msra.mxu0 0.0
    %204 = vmatprep.subr.mxu0 0.0
    %205 = vmatpush1.msra.mxu0 0.0
    %206 = vmatprep.subr.mxu0 0.0
    %207 = vmatpush1.msra.mxu0 0.0
    %208 = vmatprep.subr.mxu0 0.0
    %209 = vmatpush1.msra.mxu0 0.0
    %210 = vmatprep.subr.mxu0 0.0
    %211 = vmatpush1.msra.mxu0 0.0
    %212 = vmatprep.subr.mxu0 0.0
    %213 = vmatpush1.msra.mxu0 0.0
    %214 = vmatprep.subr.mxu0 0.0
    %215 = vmatpush1.msra.mxu0 0.0
    %216 = vmatprep.subr.mxu0 0.0
    %217 = vmatpush1.msra.mxu0 0.0
    %218 = vmatprep.subr.mxu0 0.0
    %219 = vmatpush1.msra.mxu0 0.0
    %220 = vmatprep.subr.mxu0 0.0
    %221 = vmatpush1.msra.mxu0 0.0
    %222 = vmatprep.mubr.f32.mxu0 0.0
    %v223 = vand.u32 %v57, 4294901760
    %224 = vmatmul.mubr.f32.gmra.mrb[0].mxu0 %v223
    %v225 = vpop.f32.mrb[0].mxu0
    %v226 = vadd.f32 %v135, %v225
    %v227 = vpop.f32.mrb[0].mxu0
    %228 = vdwg.mxu0
    %229 = vmatprep.subr.mxu0 0.0
    %v230 = vand.u32 %v38, 4294901760
    %v231 = vsub.f32 %v38, %v230
    %232 = vmatpush1.msra.mxu0 %v231
    %233 = vmatprep.subr.mxu0 0.0
    %v234 = vand.u32 %v39, 4294901760
    %v235 = vsub.f32 %v39, %v234
    %236 = vmatpush1.msra.mxu0 %v235
    %237 = vmatprep.subr.mxu0 0.0
    %v238 = vand.u32 %v40, 4294901760
    %v239 = vsub.f32 %v40, %v238
    %240 = vmatpush1.msra.mxu0 %v239
    %241 = vmatprep.subr.mxu0 0.0
    %v242 = vand.u32 %v41, 4294901760
    %v243 = vsub.f32 %v41, %v242
    %244 = vmatpush1.msra.mxu0 %v243
    %245 = vmatprep.subr.mxu0 0.0
    %246 = vmatpush1.msra.mxu0 0.0
    %247 = vmatprep.subr.mxu0 0.0
    %248 = vmatpush1.msra.mxu0 0.0
    %249 = vmatprep.subr.mxu0 0.0
    %250 = vmatpush1.msra.mxu0 0.0
    %251 = vmatprep.subr.mxu0 0.0
    %252 = vmatpush1.msra.mxu0 0.0
    %253 = vmatprep.subr.mxu0 0.0
    %254 = vmatpush1.msra.mxu0 0.0
    %255 = vmatprep.subr.mxu0 0.0
    %256 = vmatpush1.msra.mxu0 0.0
    %257 = vmatprep.subr.mxu0 0.0
    %258 = vmatpush1.msra.mxu0 0.0
    %259 = vmatprep.subr.mxu0 0.0
    %260 = vmatpush1.msra.mxu0 0.0
    %261 = vmatprep.subr.mxu0 0.0
    %262 = vmatpush1.msra.mxu0 0.0
    %263 = vmatprep.subr.mxu0 0.0
    %264 = vmatpush1.msra.mxu0 0.0
    %265 = vmatprep.subr.mxu0 0.0
    %266 = vmatpush1.msra.mxu0 0.0
    %267 = vmatprep.subr.mxu0 0.0
    %268 = vmatpush1.msra.mxu0 0.0
    %269 = vmatprep.subr.mxu0 0.0
    %270 = vmatpush1.msra.mxu0 0.0
    %271 = vmatprep.subr.mxu0 0.0
    %272 = vmatpush1.msra.mxu0 0.0
    %273 = vmatprep.subr.mxu0 0.0
    %274 = vmatpush1.msra.mxu0 0.0
    %275 = vmatprep.subr.mxu0 0.0
    %276 = vmatpush1.msra.mxu0 0.0
    %277 = vmatprep.subr.mxu0 0.0
    %278 = vmatpush1.msra.mxu0 0.0
    %279 = vmatprep.subr.mxu0 0.0
    %280 = vmatpush1.msra.mxu0 0.0
    %281 = vmatprep.subr.mxu0 0.0
    %282 = vmatpush1.msra.mxu0 0.0
    %283 = vmatprep.subr.mxu0 0.0
    %284 = vmatpush1.msra.mxu0 0.0
    %285 = vmatprep.subr.mxu0 0.0
    %286 = vmatpush1.msra.mxu0 0.0
    %287 = vmatprep.subr.mxu0 0.0
    %288 = vmatpush1.msra.mxu0 0.0
    %289 = vmatprep.subr.mxu0 0.0
    %290 = vmatpush1.msra.mxu0 0.0
    %291 = vmatprep.subr.mxu0 0.0
    %292 = vmatpush1.msra.mxu0 0.0
    %293 = vmatprep.subr.mxu0 0.0
    %294 = vmatpush1.msra.mxu0 0.0
    %295 = vmatprep.subr.mxu0 0.0
    %296 = vmatpush1.msra.mxu0 0.0
    %297 = vmatprep.subr.mxu0 0.0
    %298 = vmatpush1.msra.mxu0 0.0
    %299 = vmatprep.subr.mxu0 0.0
    %300 = vmatpush1.msra.mxu0 0.0
    %301 = vmatprep.mubr.f32.mxu0 0.0
    %v302 = vand.u32 %v57, 4294901760
    %v303 = vsub.f32 %v57, %v302
    %304 = vmatmul.mubr.f32.gmra.mrb[0].mxu0 %v303
    %v305 = vpop.f32.mrb[0].mxu0
    %v306 = vadd.f32 %v226, %v305
    %v307 = vpop.f32.mrb[0].mxu0
    %308 = vdwg.mxu0
    %309 = vmatprep.subr.mxu0 0.0
    %v310 = vand.u32 %v38, 4294901760
    %311 = vmatpush1.msra.mxu0 %v310
    %312 = vmatprep.subr.mxu0 0.0
    %v313 = vand.u32 %v39, 4294901760
    %314 = vmatpush1.msra.mxu0 %v313
    %315 = vmatprep.subr.mxu0 0.0
    %v316 = vand.u32 %v40, 4294901760
    %317 = vmatpush1.msra.mxu0 %v316
    %318 = vmatprep.subr.mxu0 0.0
    %v319 = vand.u32 %v41, 4294901760
    %320 = vmatpush1.msra.mxu0 %v319
    %321 = vmatprep.subr.mxu0 0.0
    %322 = vmatpush1.msra.mxu0 0.0
    %323 = vmatprep.subr.mxu0 0.0
    %324 = vmatpush1.msra.mxu0 0.0
    %325 = vmatprep.subr.mxu0 0.0
    %326 = vmatpush1.msra.mxu0 0.0
    %327 = vmatprep.subr.mxu0 0.0
    %328 = vmatpush1.msra.mxu0 0.0
    %329 = vmatprep.subr.mxu0 0.0
    %330 = vmatpush1.msra.mxu0 0.0
    %331 = vmatprep.subr.mxu0 0.0
    %332 = vmatpush1.msra.mxu0 0.0
    %333 = vmatprep.subr.mxu0 0.0
    %334 = vmatpush1.msra.mxu0 0.0
    %335 = vmatprep.subr.mxu0 0.0
    %336 = vmatpush1.msra.mxu0 0.0
    %337 = vmatprep.subr.mxu0 0.0
    %338 = vmatpush1.msra.mxu0 0.0
    %339 = vmatprep.subr.mxu0 0.0
    %340 = vmatpush1.msra.mxu0 0.0
    %341 = vmatprep.subr.mxu0 0.0
    %342 = vmatpush1.msra.mxu0 0.0
    %343 = vmatprep.subr.mxu0 0.0
    %344 = vmatpush1.msra.mxu0 0.0
    %345 = vmatprep.subr.mxu0 0.0
    %346 = vmatpush1.msra.mxu0 0.0
    %347 = vmatprep.subr.mxu0 0.0
    %348 = vmatpush1.msra.mxu0 0.0
    %349 = vmatprep.subr.mxu0 0.0
    %350 = vmatpush1.msra.mxu0 0.0
    %351 = vmatprep.subr.mxu0 0.0
    %352 = vmatpush1.msra.mxu0 0.0
    %353 = vmatprep.subr.mxu0 0.0
    %354 = vmatpush1.msra.mxu0 0.0
    %355 = vmatprep.subr.mxu0 0.0
    %356 = vmatpush1.msra.mxu0 0.0
    %357 = vmatprep.subr.mxu0 0.0
    %358 = vmatpush1.msra.mxu0 0.0
    %359 = vmatprep.subr.mxu0 0.0
    %360 = vmatpush1.msra.mxu0 0.0
    %361 = vmatprep.subr.mxu0 0.0
    %362 = vmatpush1.msra.mxu0 0.0
    %363 = vmatprep.subr.mxu0 0.0
    %364 = vmatpush1.msra.mxu0 0.0
    %365 = vmatprep.subr.mxu0 0.0
    %366 = vmatpush1.msra.mxu0 0.0
    %367 = vmatprep.subr.mxu0 0.0
    %368 = vmatpush1.msra.mxu0 0.0
    %369 = vmatprep.subr.mxu0 0.0
    %370 = vmatpush1.msra.mxu0 0.0
    %371 = vmatprep.subr.mxu0 0.0
    %372 = vmatpush1.msra.mxu0 0.0
    %373 = vmatprep.subr.mxu0 0.0
    %374 = vmatpush1.msra.mxu0 0.0
    %375 = vmatprep.subr.mxu0 0.0
    %376 = vmatpush1.msra.mxu0 0.0
    %377 = vmatprep.mubr.f32.mxu0 0.0
    %v378 = vand.u32 %v57, 4294901760
    %v379 = vsub.f32 %v57, %v378
    %v380 = vand.u32 %v379, 4294901760
    %381 = vmatmul.mubr.f32.gmra.mrb[0].mxu0 %v380
    %v382 = vpop.f32.mrb[0].mxu0
    %v383 = vadd.f32 %v306, %v382
    %v384 = vpop.f32.mrb[0].mxu0
    %385 = vdwg.mxu0
    %386 = vmatprep.subr.mxu0 0.0
    %v387 = vand.u32 %v38, 4294901760
    %v388 = vsub.f32 %v38, %v387
    %v389 = vand.u32 %v388, 4294901760
    %390 = vmatpush1.msra.mxu0 %v389
    %391 = vmatprep.subr.mxu0 0.0
    %v392 = vand.u32 %v39, 4294901760
    %v393 = vsub.f32 %v39, %v392
    %v394 = vand.u32 %v393, 4294901760
    %395 = vmatpush1.msra.mxu0 %v394
    %396 = vmatprep.subr.mxu0 0.0
    %v397 = vand.u32 %v40, 4294901760
    %v398 = vsub.f32 %v40, %v397
    %v399 = vand.u32 %v398, 4294901760
    %400 = vmatpush1.msra.mxu0 %v399
    %401 = vmatprep.subr.mxu0 0.0
    %v402 = vand.u32 %v41, 4294901760
    %v403 = vsub.f32 %v41, %v402
    %v404 = vand.u32 %v403, 4294901760
    %405 = vmatpush1.msra.mxu0 %v404
    %406 = vmatprep.subr.mxu0 0.0
    %407 = vmatpush1.msra.mxu0 0.0
    %408 = vmatprep.subr.mxu0 0.0
    %409 = vmatpush1.msra.mxu0 0.0
    %410 = vmatprep.subr.mxu0 0.0
    %411 = vmatpush1.msra.mxu0 0.0
    %412 = vmatprep.subr.mxu0 0.0
    %413 = vmatpush1.msra.mxu0 0.0
    %414 = vmatprep.subr.mxu0 0.0
    %415 = vmatpush1.msra.mxu0 0.0
    %416 = vmatprep.subr.mxu0 0.0
    %417 = vmatpush1.msra.mxu0 0.0
    %418 = vmatprep.subr.mxu0 0.0
    %419 = vmatpush1.msra.mxu0 0.0
    %420 = vmatprep.subr.mxu0 0.0
    %421 = vmatpush1.msra.mxu0 0.0
    %422 = vmatprep.subr.mxu0 0.0
    %423 = vmatpush1.msra.mxu0 0.0
    %424 = vmatprep.subr.mxu0 0.0
    %425 = vmatpush1.msra.mxu0 0.0
    %426 = vmatprep.subr.mxu0 0.0
    %427 = vmatpush1.msra.mxu0 0.0
    %428 = vmatprep.subr.mxu0 0.0
    %429 = vmatpush1.msra.mxu0 0.0
    %430 = vmatprep.subr.mxu0 0.0
    %431 = vmatpush1.msra.mxu0 0.0
    %432 = vmatprep.subr.mxu0 0.0
    %433 = vmatpush1.msra.mxu0 0.0
    %434 = vmatprep.subr.mxu0 0.0
    %435 = vmatpush1.msra.mxu0 0.0
    %436 = vmatprep.subr.mxu0 0.0
    %437 = vmatpush1.msra.mxu0 0.0
    %438 = vmatprep.subr.mxu0 0.0
    %439 = vmatpush1.msra.mxu0 0.0
    %440 = vmatprep.subr.mxu0 0.0
    %441 = vmatpush1.msra.mxu0 0.0
    %442 = vmatprep.subr.mxu0 0.0
    %443 = vmatpush1.msra.mxu0 0.0
    %444 = vmatprep.subr.mxu0 0.0
    %445 = vmatpush1.msra.mxu0 0.0
    %446 = vmatprep.subr.mxu0 0.0
    %447 = vmatpush1.msra.mxu0 0.0
    %448 = vmatprep.subr.mxu0 0.0
    %449 = vmatpush1.msra.mxu0 0.0
    %450 = vmatprep.subr.mxu0 0.0
    %451 = vmatpush1.msra.mxu0 0.0
    %452 = vmatprep.subr.mxu0 0.0
    %453 = vmatpush1.msra.mxu0 0.0
    %454 = vmatprep.subr.mxu0 0.0
    %455 = vmatpush1.msra.mxu0 0.0
    %456 = vmatprep.subr.mxu0 0.0
    %457 = vmatpush1.msra.mxu0 0.0
    %458 = vmatprep.subr.mxu0 0.0
    %459 = vmatpush1.msra.mxu0 0.0
    %460 = vmatprep.subr.mxu0 0.0
    %461 = vmatpush1.msra.mxu0 0.0
    %462 = vmatprep.mubr.f32.mxu0 0.0
    %v463 = vand.u32 %v57, 4294901760
    %464 = vmatmul.mubr.f32.gmra.mrb[0].mxu0 %v463
    %v465 = vpop.f32.mrb[0].mxu0
    %v466 = vadd.f32 %v383, %v465
    %v467 = vpop.f32.mrb[0].mxu0
    %468 = vdwg.mxu0
    %469 = vmatprep.subr.mxu0 0.0
    %v470 = vand.u32 %v38, 4294901760
    %471 = vmatpush1.msra.mxu0 %v470
    %472 = vmatprep.subr.mxu0 0.0
    %v473 = vand.u32 %v39, 4294901760
    %474 = vmatpush1.msra.mxu0 %v473
    %475 = vmatprep.subr.mxu0 0.0
    %v476 = vand.u32 %v40, 4294901760
    %477 = vmatpush1.msra.mxu0 %v476
    %478 = vmatprep.subr.mxu0 0.0
    %v479 = vand.u32 %v41, 4294901760
    %480 = vmatpush1.msra.mxu0 %v479
    %481 = vmatprep.subr.mxu0 0.0
    %482 = vmatpush1.msra.mxu0 0.0
    %483 = vmatprep.subr.mxu0 0.0
    %484 = vmatpush1.msra.mxu0 0.0
    %485 = vmatprep.subr.mxu0 0.0
    %486 = vmatpush1.msra.mxu0 0.0
    %487 = vmatprep.subr.mxu0 0.0
    %488 = vmatpush1.msra.mxu0 0.0
    %489 = vmatprep.subr.mxu0 0.0
    %490 = vmatpush1.msra.mxu0 0.0
    %491 = vmatprep.subr.mxu0 0.0
    %492 = vmatpush1.msra.mxu0 0.0
    %493 = vmatprep.subr.mxu0 0.0
    %494 = vmatpush1.msra.mxu0 0.0
    %495 = vmatprep.subr.mxu0 0.0
    %496 = vmatpush1.msra.mxu0 0.0
    %497 = vmatprep.subr.mxu0 0.0
    %498 = vmatpush1.msra.mxu0 0.0
    %499 = vmatprep.subr.mxu0 0.0
    %500 = vmatpush1.msra.mxu0 0.0
    %501 = vmatprep.subr.mxu0 0.0
    %502 = vmatpush1.msra.mxu0 0.0
    %503 = vmatprep.subr.mxu0 0.0
    %504 = vmatpush1.msra.mxu0 0.0
    %505 = vmatprep.subr.mxu0 0.0
    %506 = vmatpush1.msra.mxu0 0.0
    %507 = vmatprep.subr.mxu0 0.0
    %508 = vmatpush1.msra.mxu0 0.0
    %509 = vmatprep.subr.mxu0 0.0
    %510 = vmatpush1.msra.mxu0 0.0
    %511 = vmatprep.subr.mxu0 0.0
    %512 = vmatpush1.msra.mxu0 0.0
    %513 = vmatprep.subr.mxu0 0.0
    %514 = vmatpush1.msra.mxu0 0.0
    %515 = vmatprep.subr.mxu0 0.0
    %516 = vmatpush1.msra.mxu0 0.0
    %517 = vmatprep.subr.mxu0 0.0
    %518 = vmatpush1.msra.mxu0 0.0
    %519 = vmatprep.subr.mxu0 0.0
    %520 = vmatpush1.msra.mxu0 0.0
    %521 = vmatprep.subr.mxu0 0.0
    %522 = vmatpush1.msra.mxu0 0.0
    %523 = vmatprep.subr.mxu0 0.0
    %524 = vmatpush1.msra.mxu0 0.0
    %525 = vmatprep.subr.mxu0 0.0
    %526 = vmatpush1.msra.mxu0 0.0
    %527 = vmatprep.subr.mxu0 0.0
    %528 = vmatpush1.msra.mxu0 0.0
    %529 = vmatprep.subr.mxu0 0.0
    %530 = vmatpush1.msra.mxu0 0.0
    %531 = vmatprep.subr.mxu0 0.0
    %532 = vmatpush1.msra.mxu0 0.0
    %533 = vmatprep.subr.mxu0 0.0
    %534 = vmatpush1.msra.mxu0 0.0
    %535 = vmatprep.subr.mxu0 0.0
    %536 = vmatpush1.msra.mxu0 0.0
    %537 = vmatprep.mubr.f32.mxu0 0.0
    %v538 = vand.u32 %v57, 4294901760
    %539 = vmatmul.mubr.f32.gmra.mrb[0].mxu0 %v538
    %v540 = vpop.f32.mrb[0].mxu0
    %v541 = vadd.f32 %v466, %v540
    %v542 = vpop.f32.mrb[0].mxu0
    %543 = vdwg.mxu0
    %v544 = vlaneseq
    %v545 = vshrl.u32 %v544, 7
    %v546 = vsub.s32 0, %v545
    %v547 = vrot.slane %v43, %v546
    %v548 = vadd.f32 %v541, %v547
    %v549 = vxor.u32 %v548, 2147483648
    %v550 = vmul.f32 %v549, 1.442695
    %v551 = vpow.pop %v550
    %v552 = vadd.f32 %v551, 1.0
    %v553 = vrcp.pop %v552
    %v554 = vmul.f32 1.0, %v553
    %556 = vrot.lane.b32.xlu0 %v548, 64
    %v557 = vpop.permute.xlu0 %556
    %v559 = vmul.f32 %v554, %v557
    %561 = vrot.lane.b32.xlu0 %v559, 96
    %v562 = vpop.permute.xlu0 %561
    %v564 = vadd.f32 %v548, %v562
    %v565 = vtanh.pop %v564
    %v566 = vsub.f32 1.0, %v554
    %568 = vrot.lane.b32.xlu0 %v565, 64
    %v569 = vpop.permute.xlu0 %568
    %v571 = vmul.f32 %v566, %v569
    %572 = vrot.lane.b32.xlu0 %v34, 32
    %v573 = vpop.permute.xlu0 %572
    %v575 = vmul.f32 %v554, %v573
    %v576 = vadd.f32 %v571, %v575
    %v577 = vlaneseq
    %v578 = vand.u32 %v577, 127
    %v579 = vadd.s32 %v578, 128
    %580 = vset.pattern.permute.xlu0 0
    %581 = vperm.xlu0 %580, %v36
    %v582 = vpop.permute.xlu0 %581
    %vm583 = vcmp.eq.s32.totalorder %v582, %v578
    %vm584 = vcmp.eq.s32.totalorder %v582, %v579
    %v585 = vsel %vm583, 1, 0
    %v586 = vsel %vm584, 1, 0
    %v587 = vcvt.s32.f32 %v585
    %v588 = vcvt.s32.f32 %v586
    %v590 = vlaneseq
    %v591 = vshrl.u32 %v590, 7
    %v592 = vsub.s32 0, %v591
    %v593 = vrot.slane %v37, %v592
    %v594 = vlaneseq
    %v595 = vshrl.u32 %v594, 7
    %v596 = vsub.s32 1, %v595
    %v597 = vrot.slane %v37, %v596
    %v600 = vmul.f32 %v587, %v593
    %v601 = vmul.f32 %v588, %v597
    %v602 = vadd.f32 %v600, %v601
    %603 = vadd.xlane.f32.xlu0 %v602
    %v604 = vpop.xlane.xlu0 %603
    %v605 = vlaneseq
    %v606 = vshrl.u32 %v605, 7
    %v607 = vsub.s32 0, %v606
    %v608 = vrot.slane %v44, %v607
    %610 = vrot.lane.b32.xlu0 %v608, 32
    %v611 = vpop.permute.xlu0 %610
    %v613 = vmul.f32 %v576, %v611
    %615 = vrot.lane.b32.xlu0 %v613, 96
    %v616 = vpop.permute.xlu0 %615
    %v618 = vsel %vm55, %v616, 0.0
    %619 = vadd.xlane.f32.xlu0 %v618
    %v620 = vpop.xlane.xlu0 %619
    %v621 = vadd.f32 %v604, %v620
    %v622 = vmax.f32 %v621, 0.0
    %624 = vrot.lane.b32.xlu0 %v576, 96
    %v625 = vpop.permute.xlu0 %624
    %v627 = vsel %vm55, %v625, %v622
    %vm628 = vcmask 269312
    %v629 = vsel %vm628, %v627, 0.0
    %630 = vst [vmem:[%s5] sm:$0xff] %v629
    // Predicated region
    $region26: #{decoder_gru_step.1} parent=1 // pred_check
      _
    $region27: #{decoder_gru_step.1} parent=1 // pred_check_branch
      %632 = sbr.rel (0) target = $region29
    $region28: #{decoder_gru_step.1} parent=1 // pred_region
      _
    $region29: #{decoder_gru_step.1} parent=1 // pred_fallthru
      _
    // Predicated region
    $region30: #{decoder_gru_step.1} parent=1 // pred_check
      _
    $region31: #{decoder_gru_step.1} parent=1 // pred_check_branch
      %634 = sbr.rel (0) target = $region33
    $region32: #{decoder_gru_step.1} parent=1 // pred_region
      _
    $region33: #{decoder_gru_step.1} parent=1 // pred_fallthru
      _
    %635 = vsyncpa [#allocation3], 1

</llo_original>
